<compile_context>
chip_gen: v7x
topology: tpu7x:2x2x1
jax: 0.10.0
libtpu: 0.0.40
codegen_flags: <defaults>
</compile_context>

<pallas_src>
import jax
import jax.numpy as jnp
from jax.experimental import pallas as pl
from jax.experimental.pallas import tpu as pltpu


def _round_up(n: int, m: int) -> int:
    return (n + m - 1) // m * m


def mlp_kernel(x_ref, w1_ref, b1_ref, w2_ref, b2_ref, o_ref):
    # fc1: bf16 MXU operands, f32 accumulation.
    h = jnp.dot(x_ref[...], w1_ref[...], preferred_element_type=jnp.float32)
    h = jnp.maximum(h + b1_ref[...], 0.0)            # bias + ReLU (f32 VPU, all chips)
    # dropout: identity in eval mode.
    # fc2: bf16 MXU operands, f32 accumulation.
    z = jnp.dot(h.astype(jnp.bfloat16), w2_ref[...],
                preferred_element_type=jnp.float32)
    z = z + b2_ref[...]
    # Exact sigmoid with a single EUP transcendental per element.
    o_ref[...] = (0.5 * (jnp.tanh(0.5 * z) + 1.0)).astype(o_ref.dtype)


def prepare_params(w1, b1, w2, b2):
    """One-time parameter prep (call at init/load time, not per forward).

    - Casts both weight matrices to bf16 (halves resident VMEM + weight DMA).
    - Zero-pads the hidden dim to a multiple of 128 (lane-dense fc1 result,
      better MXU fill for fc2). Padded hidden units are exactly zero after
      ReLU and contribute nothing to fc2, so the forward is unchanged.
    - Does NOT pad dim_input (x is the streamed operand) or dim_output (small
      outputs would blow up HBM write bytes).
    """
    Din, H = w1.shape
    O = w2.shape[1]
    H_pad = _round_up(max(H, 128), 128)

    w1_bf16 = jnp.zeros((Din, H_pad), jnp.bfloat16).at[:, :H].set(w1.astype(jnp.bfloat16))
    b1_f32 = jnp.zeros((1, H_pad), jnp.float32).at[:, :H].set(
        b1.astype(jnp.float32).reshape(1, H))
    w2_bf16 = jnp.zeros((H_pad, O), jnp.bfloat16).at[:H, :].set(w2.astype(jnp.bfloat16))
    b2_f32 = b2.astype(jnp.float32).reshape(1, O)
    return w1_bf16, b1_f32, w2_bf16, b2_f32


def mlp_forward(x, params, *, max_block_b=1024):
    """x: (B, Din) f32/bf16, params from prepare_params. Returns (B, dim_output) f32."""
    w1_bf16, b1_f32, w2_bf16, b2_f32 = params
    B, Din = x.shape
    H_pad = w1_bf16.shape[1]
    O = w2_bf16.shape[1]
    assert w1_bf16.shape[0] == Din and w2_bf16.shape[0] == H_pad

    # Stream x as bf16. (In production the producer should already emit bf16;
    # this cast is a no-op when it does.)
    x_bf16 = x if x.dtype == jnp.bfloat16 else x.astype(jnp.bfloat16)

    # Per-chip VMEM budget: ~80% of physical VMEM (≈51 MiB on v7x, ≈102 MiB on
    # v5e/v6e) leaves headroom for compiler internal scratch / double buffers.
    try:
        phys_vmem = int(pltpu.get_tpu_info().vmem_capacity_bytes)
    except Exception:
        phys_vmem = 64 * 1024 * 1024        # conservative: v7x per-TC VMEM
    vmem_cap = int(phys_vmem * 0.8)

    # Resident (constant index_map) operands: bf16 weights + f32 biases.
    resident_bytes = (Din * H_pad + H_pad * O) * 2 + (H_pad + O) * 4
    # TODO(synk): if resident bf16 weights alone approach vmem_cap (very large
    # Din*H), switch to a contraction-axis grid (K-split + f32 accumulator) so
    # weights stream instead of staying resident.

    def tile_bytes(bb):
        return (2 * bb * Din * 2 +          # x tiles, bf16, double-buffered
                2 * bb * O * 4 +            # out tiles, f32, double-buffered
                bb * H_pad * 6)             # fc1 activations (f32 + bf16 copy)

    # Batch tiling:
    #  - at least 2 tiles when B is large enough (v7x megacore sharding; the
    #    extra ~0.35us grid step is negligible on single-TC v5e/v6e),
    #  - tile count chosen so last-tile padding waste is small,
    #  - block_b multiple of 16 (bf16 sublane packing),
    #  - shrink block_b (instead of inflating the VMEM limit) until it fits.
    min_tiles = 2 if B >= 32 else 1
    n_tiles = max(pl.cdiv(B, max_block_b), min_tiles)
    block_b = max(16, _round_up(pl.cdiv(B, n_tiles), 16))
    while block_b > 16 and resident_bytes + 2 * tile_bytes(block_b) > vmem_cap:
        block_b = max(16, _round_up(block_b // 2, 16))

    B_pad = _round_up(B, block_b)
    grid = (B_pad // block_b,)
    x_p = x_bf16 if B_pad == B else jnp.pad(x_bf16, ((0, B_pad - B), (0, 0)))

    vmem_limit = int(min(vmem_cap,
                         max(32 * 1024 * 1024,
                             2 * (resident_bytes + tile_bytes(block_b)))))

    flops = 2 * B_pad * (Din * H_pad + H_pad * O)
    bytes_accessed = (x_p.size * 2 + w1_bf16.size * 2 + w2_bf16.size * 2 +
                      b1_f32.size * 4 + b2_f32.size * 4 + B_pad * O * 4)

    out = pl.pallas_call(
        mlp_kernel,
        out_shape=jax.ShapeDtypeStruct((B_pad, O), jnp.float32),
        grid=grid,
        in_specs=[
            pl.BlockSpec((block_b, Din), lambda i: (i, 0)),    # x tile streams (bf16)
            pl.BlockSpec((Din, H_pad), lambda i: (0, 0)),      # w1 resident (bf16)
            pl.BlockSpec((1, H_pad), lambda i: (0, 0)),        # b1 resident (f32)
            pl.BlockSpec((H_pad, O), lambda i: (0, 0)),        # w2 resident (bf16)
            pl.BlockSpec((1, O), lambda i: (0, 0)),            # b2 resident (f32)
        ],
        out_specs=pl.BlockSpec((block_b, O), lambda i: (i, 0)),
        compiler_params=pltpu.CompilerParams(
            dimension_semantics=("parallel",),   # v7x: batch tiles across 2 TCs
            vmem_limit_bytes=vmem_limit,
        ),
        cost_estimate=pl.CostEstimate(
            flops=int(flops),
            transcendentals=int(B_pad * O),
            bytes_accessed=int(bytes_accessed),
        ),
    )(x_p, w1_bf16, b1_f32, w2_bf16, b2_f32)

    return out[:B]


def init_params(key, dim_input, dim_hidden, dim_output):
    """Deterministic init mimicking torch.nn.Linear (uniform +/- 1/sqrt(fan_in)).

    Weights are stored as (in, out), i.e. transpose of torch's (out, in).
    """
    k1, k2, k3, k4 = jax.random.split(key, 4)
    bound1 = 1.0 / (dim_input ** 0.5)
    bound2 = 1.0 / (dim_hidden ** 0.5)
    w1 = jax.random.uniform(k1, (dim_input, dim_hidden), jnp.float32, -bound1, bound1)
    b1 = jax.random.uniform(k2, (1, dim_hidden), jnp.float32, -bound1, bound1)
    w2 = jax.random.uniform(k3, (dim_hidden, dim_output), jnp.float32, -bound2, bound2)
    b2 = jax.random.uniform(k4, (1, dim_output), jnp.float32, -bound2, bound2)
    return w1, b1, w2, b2


if __name__ == "__main__":
    # Small shapes consistent with the module's forward (batch of flat features).
    B, DIM_INPUT, DIM_HIDDEN, DIM_OUTPUT = 16, 32, 64, 16

    key = jax.random.PRNGKey(0)
    kx, kp = jax.random.split(key)
    x_f32 = jax.random.normal(kx, (B, DIM_INPUT), dtype=jnp.float32)
    # Producer-side bf16 cast (the kernel streams x as bf16).
    x = x_f32.astype(jnp.bfloat16)

    w1, b1, w2, b2 = init_params(kp, DIM_INPUT, DIM_HIDDEN, DIM_OUTPUT)
    params = prepare_params(w1, b1, w2, b2)   # one-time weight prep

    out = mlp_forward(x, params)
    jax.block_until_ready(out)
    assert out.shape == (B, DIM_OUTPUT)

    # Precision-matched reference (bf16 MXU operands, f32 accumulation, exact sigmoid).
    x_in = x.astype(jnp.float32)   # values actually seen by the kernel
    h_ref = jnp.maximum(
        jnp.dot(x, w1.astype(jnp.bfloat16), preferred_element_type=jnp.float32) + b1, 0.0)
    logits_ref = jnp.dot(h_ref.astype(jnp.bfloat16), w2.astype(jnp.bfloat16),
                         preferred_element_type=jnp.float32) + b2
    ref_bf16 = jax.nn.sigmoid(logits_ref)
    assert jnp.allclose(out, ref_bf16, atol=2e-3, rtol=2e-3)

    # Full-precision (PyTorch-semantics) reference on the same input values;
    # looser tolerance because the kernel uses bf16 matmul operands.
    ref_f32 = jax.nn.sigmoid(jnp.maximum(x_in @ w1 + b1, 0.0) @ w2 + b2)
    assert jnp.allclose(out, ref_f32, atol=2e-2, rtol=2e-2)

    print("KERNEL_OK")
</pallas_src>

<mosaic_0001>
module attributes {stable_mosaic.version = 11 : i64} {
  func.func @mlp_kernel(%arg0: i32, %arg1: memref<16x32xbf16, #tpu.memory_space<vmem>>, %arg2: memref<32x128xbf16, #tpu.memory_space<vmem>>, %arg3: memref<1x128xf32, #tpu.memory_space<vmem>>, %arg4: memref<128x16xbf16, #tpu.memory_space<vmem>>, %arg5: memref<1x16xf32, #tpu.memory_space<vmem>>, %arg6: memref<16x16xf32, #tpu.memory_space<vmem>>) attributes {dimension_semantics = [#tpu.dimension_semantics<parallel>], iteration_bounds = array<i64: 1>, scalar_prefetch = 0 : i64, scratch_operands = 0 : i64, tpu.core_type = #tpu.core_type<tc>, window_params = [{transform_indices = @transform_0, window_bounds = array<i64: 16, 32>}, {pipeline_mode = #tpu.pipeline_mode<synchronous>, transform_indices = @transform_1, window_bounds = array<i64: 32, 128>}, {pipeline_mode = #tpu.pipeline_mode<synchronous>, transform_indices = @transform_2, window_bounds = array<i64: 1, 128>}, {pipeline_mode = #tpu.pipeline_mode<synchronous>, transform_indices = @transform_3, window_bounds = array<i64: 128, 16>}, {pipeline_mode = #tpu.pipeline_mode<synchronous>, transform_indices = @transform_4, window_bounds = array<i64: 1, 16>}, {transform_indices = @transform_5, window_bounds = array<i64: 16, 16>}]} {
    %c0 = arith.constant 0 : index
    %c0_0 = arith.constant 0 : index
    %0 = vector.load %arg1[%c0, %c0_0] : memref<16x32xbf16, #tpu.memory_space<vmem>>, vector<16x32xbf16>
    %c0_1 = arith.constant 0 : index
    %c0_2 = arith.constant 0 : index
    %1 = vector.load %arg2[%c0_1, %c0_2] : memref<32x128xbf16, #tpu.memory_space<vmem>>, vector<32x128xbf16>
    %cst = arith.constant dense<0.000000e+00> : vector<16x128xf32>
    %2 = tpu.matmul %0, %1, %cst {dimension_numbers = #tpu.dot_dimension_numbers<[1], [0], [0], [1], [0, 0, 1, 1], [], []>} : vector<16x32xbf16>, vector<32x128xbf16>, vector<16x128xf32> -> vector<16x128xf32>
    %c0_3 = arith.constant 0 : index
    %c0_4 = arith.constant 0 : index
    %3 = vector.load %arg3[%c0_3, %c0_4] : memref<1x128xf32, #tpu.memory_space<vmem>>, vector<1x128xf32>
    %4 = vector.broadcast %3 : vector<1x128xf32> to vector<16x128xf32>
    %5 = arith.addf %2, %4 : vector<16x128xf32>
    %cst_5 = arith.constant 0.000000e+00 : f32
    %6 = vector.broadcast %cst_5 : f32 to vector<16x128xf32>
    %7 = arith.maximumf %5, %6 : vector<16x128xf32>
    %8 = arith.truncf %7 : vector<16x128xf32> to vector<16x128xbf16>
    %c0_6 = arith.constant 0 : index
    %c0_7 = arith.constant 0 : index
    %9 = vector.load %arg4[%c0_6, %c0_7] : memref<128x16xbf16, #tpu.memory_space<vmem>>, vector<128x16xbf16>
    %cst_8 = arith.constant dense<0.000000e+00> : vector<16x16xf32>
    %10 = tpu.matmul %8, %9, %cst_8 {dimension_numbers = #tpu.dot_dimension_numbers<[1], [0], [0], [1], [0, 0, 1, 1], [], []>} : vector<16x128xbf16>, vector<128x16xbf16>, vector<16x16xf32> -> vector<16x16xf32>
    %c0_9 = arith.constant 0 : index
    %c0_10 = arith.constant 0 : index
    %11 = vector.load %arg5[%c0_9, %c0_10] : memref<1x16xf32, #tpu.memory_space<vmem>>, vector<1x16xf32>
    %12 = vector.broadcast %11 : vector<1x16xf32> to vector<16x16xf32>
    %13 = arith.addf %10, %12 : vector<16x16xf32>
    %cst_11 = arith.constant 5.000000e-01 : f32
    %14 = vector.broadcast %cst_11 : f32 to vector<16x16xf32>
    %15 = arith.mulf %14, %13 : vector<16x16xf32>
    %16 = math.tanh %15 : vector<16x16xf32>
    %cst_12 = arith.constant 1.000000e+00 : f32
    %17 = vector.broadcast %cst_12 : f32 to vector<16x16xf32>
    %18 = arith.addf %16, %17 : vector<16x16xf32>
    %cst_13 = arith.constant 5.000000e-01 : f32
    %19 = vector.broadcast %cst_13 : f32 to vector<16x16xf32>
    %20 = arith.mulf %19, %18 : vector<16x16xf32>
    %c0_14 = arith.constant 0 : index
    %c0_15 = arith.constant 0 : index
    %21 = vector.load %arg6[%c0_14, %c0_15] : memref<16x16xf32, #tpu.memory_space<vmem>>, vector<16x16xf32>
    tpu.vector_store %arg6[%c0_14, %c0_15], %20 {strides = array<i32>} : memref<16x16xf32, #tpu.memory_space<vmem>>, vector<16x16xf32>,
    return
  }
  func.func @transform_0(%arg0: i32) -> (i32, i32) {
    %c0_i32 = arith.constant 0 : i32
    %c0_i32_0 = arith.constant 0 : i32
    return %arg0, %c0_i32 : i32, i32
  }
  func.func @transform_1(%arg0: i32) -> (i32, i32) {
    %c0_i32 = arith.constant 0 : i32
    %c0_i32_0 = arith.constant 0 : i32
    %c0_i32_1 = arith.constant 0 : i32
    return %c0_i32, %c0_i32_0 : i32, i32
  }
  func.func @transform_2(%arg0: i32) -> (i32, i32) {
    %c0_i32 = arith.constant 0 : i32
    %c0_i32_0 = arith.constant 0 : i32
    %c0_i32_1 = arith.constant 0 : i32
    return %c0_i32, %c0_i32_0 : i32, i32
  }
  func.func @transform_3(%arg0: i32) -> (i32, i32) {
    %c0_i32 = arith.constant 0 : i32
    %c0_i32_0 = arith.constant 0 : i32
    %c0_i32_1 = arith.constant 0 : i32
    return %c0_i32, %c0_i32_0 : i32, i32
  }
  func.func @transform_4(%arg0: i32) -> (i32, i32) {
    %c0_i32 = arith.constant 0 : i32
    %c0_i32_0 = arith.constant 0 : i32
    %c0_i32_1 = arith.constant 0 : i32
    return %c0_i32, %c0_i32_0 : i32, i32
  }
  func.func @transform_5(%arg0: i32) -> (i32, i32) {
    %c0_i32 = arith.constant 0 : i32
    %c0_i32_0 = arith.constant 0 : i32
    return %arg0, %c0_i32 : i32, i32
  }
}

</mosaic_0001>

<llo_original>
// kernel: tpu_custom_call.1
$region0: #{tpu_custom_call.1}
  #allocation0 [shape = 'u32[]', space=smem, size = 0x4, offset = 0x4, fixed_abs, tag = 'smem constant byte address 0x4 - core index']
  #allocation1 [shape = 'u32[144,128]{1,0:T(1,128)}', space=vmem, size = 0x12000, scoped, tag = 'internal scratch']
  %s0 = inlined_call_operand.vmem [shape: bf16[16,32], index: 0, kind: input, shape index: {}]
  %s1 = inlined_call_operand.vmem [shape: bf16[32,128], index: 1, kind: input, shape index: {}]
  %s2 = inlined_call_operand.vmem [shape: f32[1,128], index: 2, kind: input, shape index: {}]
  %s3 = inlined_call_operand.vmem [shape: bf16[128,16], index: 3, kind: input, shape index: {}]
  %s4 = inlined_call_operand.vmem [shape: f32[1,16], index: 4, kind: input, shape index: {}]
  %s5 = inlined_call_operand.hbm [shape: f32[16,16], index: 5, kind: output, shape index: {}]
  %s6 = sld [smem:[#allocation0]]
  $region30: #{tpu_custom_call.1} parent=0
    _
  %s8 = ssub.s32 1, %s6
  %s9 = scalar_select 0, %s8, %s6
  $region1: #{tpu_custom_call.1} parent=0
    #allocation2 [shape = 'u8[8192]{0}', space=vmem, size = 0x2000, scoped, tag = 'output window, operand 0, single buffered']
    #allocation3 [shape = 's32[1]{0}', space=sflag, size = 0x4, scoped, tag = 'scoped memory for tpu_custom_call.1']
    %10 = vsyncpa [#allocation3], 0
    // Predicated region
    $region2: #{tpu_custom_call.1} parent=1 // pred_check
      _
    $region3: #{tpu_custom_call.1} parent=1 // pred_check_branch
      %12 = sbr.rel (0) target = $region5
    $region4: #{tpu_custom_call.1} parent=1 // pred_region
      _
    $region5: #{tpu_custom_call.1} parent=1 // pred_fallthru
      _
    // Predicated region
    $region6: #{tpu_custom_call.1} parent=1 // pred_check
      _
    $region7: #{tpu_custom_call.1} parent=1 // pred_check_branch
      %14 = sbr.rel (0) target = $region9
    $region8: #{tpu_custom_call.1} parent=1 // pred_region
      _
    $region9: #{tpu_custom_call.1} parent=1 // pred_fallthru
      _
    // Predicated region
    $region10: #{tpu_custom_call.1} parent=1 // pred_check
      _
    $region11: #{tpu_custom_call.1} parent=1 // pred_check_branch
      %16 = sbr.rel (0) target = $region13
    $region12: #{tpu_custom_call.1} parent=1 // pred_region
      _
    $region13: #{tpu_custom_call.1} parent=1 // pred_fallthru
      _
    // Predicated region
    $region14: #{tpu_custom_call.1} parent=1 // pred_check
      _
    $region15: #{tpu_custom_call.1} parent=1 // pred_check_branch
      %18 = sbr.rel (0) target = $region17
    $region16: #{tpu_custom_call.1} parent=1 // pred_region
      _
    $region17: #{tpu_custom_call.1} parent=1 // pred_fallthru
      _
    // Predicated region
    $region18: #{tpu_custom_call.1} parent=1 // pred_check
      _
    $region19: #{tpu_custom_call.1} parent=1 // pred_check_branch
      %20 = sbr.rel (0) target = $region21
    $region20: #{tpu_custom_call.1} parent=1 // pred_region
      _
    $region21: #{tpu_custom_call.1} parent=1 // pred_fallthru
      _
    %v22 = vld [vmem:[%s0] sm:$0xf]
    %v23 = vld [vmem:[%s0 + $0x4] sm:$0xf]
    %v24 = vld [vmem:[%s1] sm:$0xf]
    %v25 = vld [vmem:[%s1 + $0x4] sm:$0xf]
    %v26 = vld [vmem:[%s1 + $0x8] sm:$0xf]
    %v27 = vld [vmem:[%s1 + $0xc] sm:$0xf]
    %v28 = vld [vmem:[%s2] sm:$0x1]
    %v30 = vlaneseq
    %v31 = vshrl.u32 %v30, 7
    %v32 = vsub.s32 0, %v31
    %v33 = vrot.slane %v28, %v32
    %v37 = vunpack.c.l.b16 %v22
    %v38 = vunpack.c.l.b16 %v23
    %v39 = vpack.c.b16 %v38, %v37
    %v44 = vunpack.c.l.b16 %v24
    %v45 = vunpack.c.l.b16 %v25
    %v46 = vunpack.c.l.b16 %v26
    %v47 = vunpack.c.l.b16 %v27
    %v48 = vpack.c.b16 %v45, %v44
    %v49 = vpack.c.b16 %v47, %v46
    %vm52 = vcmask 261120
    %v54 = vsel %vm52, %v39, 0
    %56 = vmatprep.subr.bf16.mxu0 0
    %57 = vmatpush1.bf16.msra.mxu0 %v48
    %58 = vmatprep.subr.bf16.mxu0 0
    %59 = vmatpush1.bf16.msra.mxu0 %v49
    %60 = vmatprep.subr.bf16.mxu0 0
    %61 = vmatpush1.bf16.msra.mxu0 0
    %62 = vmatprep.subr.bf16.mxu0 0
    %63 = vmatpush1.bf16.msra.mxu0 0
    %64 = vmatprep.subr.bf16.mxu0 0
    %65 = vmatpush1.bf16.msra.mxu0 0
    %66 = vmatprep.subr.bf16.mxu0 0
    %67 = vmatpush1.bf16.msra.mxu0 0
    %68 = vmatprep.subr.bf16.mxu0 0
    %69 = vmatpush1.bf16.msra.mxu0 0
    %70 = vmatprep.subr.bf16.mxu0 0
    %71 = vmatpush1.bf16.msra.mxu0 0
    %72 = vmatprep.subr.bf16.mxu0 0
    %73 = vmatpush1.bf16.msra.mxu0 0
    %74 = vmatprep.subr.bf16.mxu0 0
    %75 = vmatpush1.bf16.msra.mxu0 0
    %76 = vmatprep.subr.bf16.mxu0 0
    %77 = vmatpush1.bf16.msra.mxu0 0
    %78 = vmatprep.subr.bf16.mxu0 0
    %79 = vmatpush1.bf16.msra.mxu0 0
    %80 = vmatprep.subr.bf16.mxu0 0
    %81 = vmatpush1.bf16.msra.mxu0 0
    %82 = vmatprep.subr.bf16.mxu0 0
    %83 = vmatpush1.bf16.msra.mxu0 0
    %84 = vmatprep.subr.bf16.mxu0 0
    %85 = vmatpush1.bf16.msra.mxu0 0
    %86 = vmatprep.subr.bf16.mxu0 0
    %87 = vmatpush1.bf16.msra.mxu0 0
    %88 = vmatprep.mubr.bf16.mxu0 0
    %89 = vmatmul.mubr.bf16.gmra.mrb[0].mxu0 %v54
    %v90 = vpop.f32.mrb[0].mxu0
    %v91 = vadd.f32 %v33, %v90
    %v92 = vpop.f32.mrb[0].mxu0
    %v93 = vpop.f32.mrb[0].mxu0
    %v94 = vadd.f32 %v33, %v93
    %v95 = vpop.f32.mrb[0].mxu0
    %96 = vdwg.mxu0
    %v97 = vmax.f32 %v91, 0.0
    %v98 = vmax.f32 %v94, 0.0
    %v99 = vpack.c.bf16 %v98, %v97
    %v100 = vld [vmem:[%s3] sm:$0xf]
    %v101 = vld [vmem:[%s3 + $0x4] sm:$0xf]
    %v102 = vld [vmem:[%s3 + $0x8] sm:$0xf]
    %v103 = vld [vmem:[%s3 + $0xc] sm:$0xf]
    %v104 = vld [vmem:[%s3 + $0x10] sm:$0xf]
    %v105 = vld [vmem:[%s3 + $0x14] sm:$0xf]
    %v106 = vld [vmem:[%s3 + $0x18] sm:$0xf]
    %v107 = vld [vmem:[%s3 + $0x1c] sm:$0xf]
    %v108 = vld [vmem:[%s3 + $0x20] sm:$0xf]
    %v109 = vld [vmem:[%s3 + $0x24] sm:$0xf]
    %v110 = vld [vmem:[%s3 + $0x28] sm:$0xf]
    %v111 = vld [vmem:[%s3 + $0x2c] sm:$0xf]
    %v112 = vld [vmem:[%s3 + $0x30] sm:$0xf]
    %v113 = vld [vmem:[%s3 + $0x34] sm:$0xf]
    %v114 = vld [vmem:[%s3 + $0x38] sm:$0xf]
    %v115 = vld [vmem:[%s3 + $0x3c] sm:$0xf]
    %v116 = vld [vmem:[%s4] sm:$0x1]
    %v118 = vlaneseq
    %v119 = vshrl.u32 %v118, 7
    %v120 = vsub.s32 0, %v119
    %v121 = vrot.slane %v116, %v120
    %v139 = vunpack.c.l.b16 %v100
    %v140 = vunpack.c.l.b16 %v101
    %v141 = vunpack.c.l.b16 %v102
    %v142 = vunpack.c.l.b16 %v103
    %v143 = vunpack.c.l.b16 %v104
    %v144 = vunpack.c.l.b16 %v105
    %v145 = vunpack.c.l.b16 %v106
    %v146 = vunpack.c.l.b16 %v107
    %v147 = vunpack.c.l.b16 %v108
    %v148 = vunpack.c.l.b16 %v109
    %v149 = vunpack.c.l.b16 %v110
    %v150 = vunpack.c.l.b16 %v111
    %v151 = vunpack.c.l.b16 %v112
    %v152 = vunpack.c.l.b16 %v113
    %v153 = vunpack.c.l.b16 %v114
    %v154 = vunpack.c.l.b16 %v115
    %v155 = vpack.c.b16 %v140, %v139
    %v156 = vpack.c.b16 %v142, %v141
    %v157 = vpack.c.b16 %v144, %v143
    %v158 = vpack.c.b16 %v146, %v145
    %v159 = vpack.c.b16 %v148, %v147
    %v160 = vpack.c.b16 %v150, %v149
    %v161 = vpack.c.b16 %v152, %v151
    %v162 = vpack.c.b16 %v154, %v153
    %171 = vmatprep.subr.bf16.mxu0 0
    %172 = vmatpush1.bf16.msra.mxu0 %v155
    %173 = vmatprep.subr.bf16.mxu0 0
    %174 = vmatpush1.bf16.msra.mxu0 %v156
    %175 = vmatprep.subr.bf16.mxu0 0
    %176 = vmatpush1.bf16.msra.mxu0 %v157
    %177 = vmatprep.subr.bf16.mxu0 0
    %178 = vmatpush1.bf16.msra.mxu0 %v158
    %179 = vmatprep.subr.bf16.mxu0 0
    %180 = vmatpush1.bf16.msra.mxu0 %v159
    %181 = vmatprep.subr.bf16.mxu0 0
    %182 = vmatpush1.bf16.msra.mxu0 %v160
    %183 = vmatprep.subr.bf16.mxu0 0
    %184 = vmatpush1.bf16.msra.mxu0 %v161
    %185 = vmatprep.subr.bf16.mxu0 0
    %186 = vmatpush1.bf16.msra.mxu0 %v162
    %187 = vmatprep.subr.bf16.mxu0 0
    %188 = vmatpush1.bf16.msra.mxu0 0
    %189 = vmatprep.subr.bf16.mxu0 0
    %190 = vmatpush1.bf16.msra.mxu0 0
    %191 = vmatprep.subr.bf16.mxu0 0
    %192 = vmatpush1.bf16.msra.mxu0 0
    %193 = vmatprep.subr.bf16.mxu0 0
    %194 = vmatpush1.bf16.msra.mxu0 0
    %195 = vmatprep.subr.bf16.mxu0 0
    %196 = vmatpush1.bf16.msra.mxu0 0
    %197 = vmatprep.subr.bf16.mxu0 0
    %198 = vmatpush1.bf16.msra.mxu0 0
    %199 = vmatprep.subr.bf16.mxu0 0
    %200 = vmatpush1.bf16.msra.mxu0 0
    %201 = vmatprep.subr.bf16.mxu0 0
    %202 = vmatpush1.bf16.msra.mxu0 0
    %203 = vmatprep.mubr.bf16.mxu0 0
    %204 = vmatmul.mubr.bf16.gmra.mrb[0].mxu0 %v99
    %v205 = vpop.f32.mrb[0].mxu0
    %v206 = vadd.f32 %v121, %v205
    %v207 = vpop.f32.mrb[0].mxu0
    %v208 = vpop.f32.mrb[0].mxu0
    %v209 = vadd.f32 %v121, %v208
    %v210 = vpop.f32.mrb[0].mxu0
    %211 = vdwg.mxu0
    %v212 = vmul.f32 %v206, 0.5
    %v213 = vmul.f32 %v209, 0.5
    %v214 = vtanh.pop %v212
    %v215 = vtanh.pop %v213
    %v216 = vadd.f32 %v214, 1.0
    %v217 = vadd.f32 %v215, 1.0
    %v218 = vmul.f32 %v216, 0.5
    %v219 = vmul.f32 %v217, 0.5
    %vm220 = vcmask 130048
    %221 = vst.msk [vmem:[#allocation2] sm:$0xff] %vm220, %v218
    %222 = vst.msk [vmem:[#allocation2 + $0x8] sm:$0xff] %vm220, %v219
    // Predicated region
    $region22: #{tpu_custom_call.1} parent=1 // pred_check
      _
    $region23: #{tpu_custom_call.1} parent=1 // pred_check_branch
      %224 = sbr.rel (0) target = $region25
    $region24: #{tpu_custom_call.1} parent=1 // pred_region
      %s226 = ssub.s32 256, 256
      %227 = vsyncadd [#allocation3], %s226
      %s228 = sshll.u32 [#allocation2], 4
      %s229 = int_to_ptr.vmem [resolvable:$true] %s228
      %234 = dma.vmem_to_hbm [thread:$0]  %s229, 256, %s5, [#allocation3], 128, 128, 8
    $region25: #{tpu_custom_call.1} parent=1 // pred_fallthru
      _
    // Predicated region
    $region26: #{tpu_custom_call.1} parent=1 // pred_check
      _
    $region27: #{tpu_custom_call.1} parent=1 // pred_check_branch
      %236 = sbr.rel (0) target = $region29
    $region28: #{tpu_custom_call.1} parent=1 // pred_region
      %237 = dma.done [#allocation3], 256
    $region29: #{tpu_custom_call.1} parent=1 // pred_fallthru
      _
    %238 = vsyncpa [#allocation3], 1

</llo_original>
